<compile_context>
chip_gen: v7x
topology: tpu7x:2x2x1
jax: 0.10.0
libtpu: 0.0.40
codegen_flags: <defaults>
</compile_context>

<pallas_src>
import functools

import numpy as np
import jax
import jax.numpy as jnp
from jax.experimental import pallas as pl
from jax.experimental.pallas import tpu as pltpu


# ------------------------------- kernels --------------------------------------

def _pool_kernel_single(x_ref, p_ref, o_ref):
    # Single K tile: no accumulator / predication needed.
    o_ref[...] = jnp.dot(x_ref[...], p_ref[...],
                         preferred_element_type=jnp.float32).astype(o_ref.dtype)


def _pool_kernel_reduce(x_ref, p_ref, o_ref, acc_ref):
    k = pl.program_id(1)

    @pl.when(k == 0)
    def _():
        acc_ref[...] = jnp.zeros_like(acc_ref)

    acc_ref[...] += jnp.dot(x_ref[...], p_ref[...],
                            preferred_element_type=jnp.float32)

    @pl.when(k == pl.num_programs(1) - 1)
    def _():
        o_ref[...] = acc_ref[...].astype(o_ref.dtype)


# --------------------------- pooling matrix (cached) ---------------------------

def _adaptive_weights(in_size, out_size):
    """(in_size, out_size); column o holds 1/len over window [start_o, end_o)."""
    m = np.zeros((in_size, out_size), dtype=np.float32)
    for o in range(out_size):
        start = (o * in_size) // out_size
        end = -((-(o + 1) * in_size) // out_size)     # ceil((o+1)*in/out)
        m[start:end, o] = 1.0 / (end - start)
    return m


@functools.lru_cache(maxsize=None)
def _pooling_matrix(H, W, OH, OW, op_pad, k_rows):
    """Separable pooling matrix, zero-padded to (k_rows, op_pad); device-resident."""
    a_h = _adaptive_weights(H, OH)                    # (H, OH)
    a_w = _adaptive_weights(W, OW)                    # (W, OW)
    p = np.zeros((k_rows, op_pad), dtype=np.float32)
    p[:H * W, :OH * OW] = np.einsum('hu,wv->hwuv', a_h, a_w).reshape(H * W, OH * OW)
    return jnp.asarray(p)


# ------------------------------- tiling helpers --------------------------------

def _round_up(x, m):
    return -(-x // m) * m


def _round_down(x, m):
    return (x // m) * m


def _vmem_budget_bytes():
    cap = None
    try:
        cap = getattr(pltpu.get_tpu_info(), "vmem_capacity_bytes", None)
    except Exception:
        cap = None
    if not cap:
        cap = 64 * 1024 * 1024        # v7x per-core worst case
    return (cap * 3) // 4             # ~48 MiB on v7x, ~96 MiB on v5e/v6e


def _largest_aligned_divisor(n, pref, align):
    """Largest d with d | n, d % align == 0, d <= pref; None if none exists."""
    if n % align != 0:
        return None
    m = n // align
    limit = max(1, min(pref // align, m))
    for d in range(limit, 0, -1):
        if m % d == 0:
            return d * align
    return None


# --------------------------------- wrapper --------------------------------------

def complex_avg_pool2d(x, output_size, complex_axis=1):
    if isinstance(output_size, int):
        output_size = (output_size, output_size)
    # TODO(synk): complex_axis on a spatial dim (2/3) would change the output-shape
    # semantics of chunk/pool/cat; only batch/channel complex axes are supported here
    # (matching the module's default complex_axis=1), where pooling commutes exactly.
    assert complex_axis in (0, 1)

    B, C, H, W = x.shape
    OH, OW = output_size
    N, K, OP = B * C, H * W, OH * OW
    # Lane-dense output; never pad beyond the first 128-multiple (extra zero columns
    # would only inflate MXU work -- a concern on v5e for very small true OP).
    OP_pad = max(128, _round_up(OP, 128))

    itemsize = jnp.dtype(x.dtype).itemsize
    align = 8 * (4 // itemsize)           # sublane packing: f32->8, bf16->16, int8->32
    budget = _vmem_budget_bytes()

    # Guarantee >= 2 M tiles when N allows, so v7x's second TensorCore gets work.
    cap_tn = max(align, _round_up(-(-N // 2), align))

    x2 = x.reshape(N, K)                  # contiguous reshape: no extra HBM copy

    p_bytes = K * OP_pad * 4
    row_a = 2 * K * itemsize + 2 * OP_pad * itemsize   # dbl-buffered x row + out row
    fix_a = 2 * p_bytes                                 # P (counted double-buffered)

    if fix_a + align * row_a <= budget:
        # ---------------- Regime A: resident P, full-K tile, no accumulator ------
        tn_max = _round_down((budget - fix_a) // row_a, align)
        tn = max(align, min(1024, tn_max, cap_tn))
        tn = min(tn, _round_up(N, align))
        p = _pooling_matrix(H, W, OH, OW, OP_pad, K)

        out = pl.pallas_call(
            _pool_kernel_single,
            out_shape=jax.ShapeDtypeStruct((N, OP_pad), x.dtype),
            grid_spec=pltpu.PrefetchScalarGridSpec(
                num_scalar_prefetch=0,
                grid=(pl.cdiv(N, tn),),
                in_specs=[
                    pl.BlockSpec((tn, K), lambda i: (i, 0)),          # activation tile
                    pl.BlockSpec((K, OP_pad), lambda i: (0, 0)),      # resident P
                ],
                out_specs=pl.BlockSpec((tn, OP_pad), lambda i: (i, 0)),
            ),
            compiler_params=pltpu.CompilerParams(
                dimension_semantics=("parallel",),
                vmem_limit_bytes=budget),
        )(x2, p)
    else:
        # ---------------- Regime B: large K -> tile K, f32 accumulator -----------
        tk = _largest_aligned_divisor(K, 2048, 128)
        Kp = K
        if tk is None:
            # No 128-aligned divisor of K: zero-pad the reduction axis (zero P rows
            # contribute nothing). Rare; costs one extra HBM pass over x.
            Kp = _round_up(K, 128)
            tk = _largest_aligned_divisor(Kp, 2048, 128)
            x2 = jnp.pad(x2, ((0, 0), (0, Kp - K)))
        p = _pooling_matrix(H, W, OH, OW, OP_pad, Kp)

        row_b = 2 * tk * itemsize + 2 * OP_pad * itemsize + OP_pad * 4   # + f32 acc
        fix_b = 2 * tk * OP_pad * 4                                      # streamed P
        tn_max = _round_down(max(budget - fix_b, align * row_b) // row_b, align)
        tn = max(align, min(1024, tn_max, cap_tn))
        tn = min(tn, _round_up(N, align))

        out = pl.pallas_call(
            _pool_kernel_reduce,
            out_shape=jax.ShapeDtypeStruct((N, OP_pad), x.dtype),
            grid_spec=pltpu.PrefetchScalarGridSpec(
                num_scalar_prefetch=0,
                grid=(pl.cdiv(N, tn), Kp // tk),
                in_specs=[
                    pl.BlockSpec((tn, tk), lambda i, k: (i, k)),
                    pl.BlockSpec((tk, OP_pad), lambda i, k: (k, 0)),
                ],
                out_specs=pl.BlockSpec((tn, OP_pad), lambda i, k: (i, 0)),
                scratch_shapes=[pltpu.VMEM((tn, OP_pad), jnp.float32)],
            ),
            compiler_params=pltpu.CompilerParams(
                dimension_semantics=("parallel", "arbitrary"),
                vmem_limit_bytes=budget),
        )(x2, p)

    # Drop lane padding, restore (B, C, OH, OW). Channel order is preserved, so this
    # equals cat([pool(real), pool(imag)], axis=complex_axis) exactly.
    return out[:, :OP].reshape(B, C, OH, OW)


# ----------------------------- reference (host) --------------------------------

def _ref_adaptive_avg_pool2d(x, output_size):
    OH, OW = output_size
    xn = np.asarray(x)
    B, C, H, W = xn.shape
    out = np.zeros((B, C, OH, OW), dtype=np.float32)
    for oh in range(OH):
        hs, he = (oh * H) // OH, -((-(oh + 1) * H) // OH)
        for ow in range(OW):
            ws, we = (ow * W) // OW, -((-(ow + 1) * W) // OW)
            out[:, :, oh, ow] = xn[:, :, hs:he, ws:we].mean(axis=(2, 3))
    return jnp.asarray(out)


def _reference(x, output_size, complex_axis=1):
    real, imag = jnp.split(x, 2, axis=complex_axis)
    return jnp.concatenate(
        [_ref_adaptive_avg_pool2d(real, output_size),
         _ref_adaptive_avg_pool2d(imag, output_size)],
        axis=complex_axis)


if __name__ == "__main__":
    key = jax.random.PRNGKey(0)
    B, C, H, W = 2, 4, 16, 16
    x = jax.random.normal(key, (B, C, H, W), dtype=jnp.float32)

    # Divisible case: uniform 4x4 windows.
    out = complex_avg_pool2d(x, (4, 4))
    jax.block_until_ready(out)
    ref = _reference(x, (4, 4))
    assert out.shape == (B, C, 4, 4)
    assert jnp.allclose(out, ref, atol=1e-5, rtol=1e-5)

    # Non-divisible adaptive case: overlapping, unequal windows.
    out2 = complex_avg_pool2d(x, (3, 5))
    jax.block_until_ready(out2)
    ref2 = _reference(x, (3, 5))
    assert out2.shape == (B, C, 3, 5)
    assert jnp.allclose(out2, ref2, atol=1e-5, rtol=1e-5)

    print("KERNEL_OK")
</pallas_src>

<mosaic_0001>
module attributes {stable_mosaic.version = 11 : i64} {
  func.func @_pool_kernel_single(%arg0: i32, %arg1: memref<8x256xf32, #tpu.memory_space<vmem>>, %arg2: memref<256x128xf32, #tpu.memory_space<vmem>>, %arg3: memref<8x128xf32, #tpu.memory_space<vmem>>) attributes {dimension_semantics = [#tpu.dimension_semantics<parallel>], iteration_bounds = array<i64: 1>, scalar_prefetch = 0 : i64, scratch_operands = 0 : i64, tpu.core_type = #tpu.core_type<tc>, window_params = [{transform_indices = @transform_0, window_bounds = array<i64: 8, 256>}, {pipeline_mode = #tpu.pipeline_mode<synchronous>, transform_indices = @transform_1, window_bounds = array<i64: 256, 128>}, {transform_indices = @transform_2, window_bounds = array<i64: 8, 128>}]} {
    %c0 = arith.constant 0 : index
    %c0_0 = arith.constant 0 : index
    %0 = vector.load %arg1[%c0, %c0_0] : memref<8x256xf32, #tpu.memory_space<vmem>>, vector<8x256xf32>
    %c0_1 = arith.constant 0 : index
    %c0_2 = arith.constant 0 : index
    %1 = vector.load %arg2[%c0_1, %c0_2] : memref<256x128xf32, #tpu.memory_space<vmem>>, vector<256x128xf32>
    %cst = arith.constant dense<0.000000e+00> : vector<8x128xf32>
    %2 = tpu.matmul %0, %1, %cst {dimension_numbers = #tpu.dot_dimension_numbers<[1], [0], [0], [1], [0, 0, 1, 1], [], []>} : vector<8x256xf32>, vector<256x128xf32>, vector<8x128xf32> -> vector<8x128xf32>
    %c0_3 = arith.constant 0 : index
    %c0_4 = arith.constant 0 : index
    %3 = vector.load %arg3[%c0_3, %c0_4] : memref<8x128xf32, #tpu.memory_space<vmem>>, vector<8x128xf32>
    tpu.vector_store %arg3[%c0_3, %c0_4], %2 {strides = array<i32>} : memref<8x128xf32, #tpu.memory_space<vmem>>, vector<8x128xf32>,
    return
  }
  func.func @transform_0(%arg0: i32) -> (i32, i32) {
    %c0_i32 = arith.constant 0 : i32
    %c0_i32_0 = arith.constant 0 : i32
    return %arg0, %c0_i32 : i32, i32
  }
  func.func @transform_1(%arg0: i32) -> (i32, i32) {
    %c0_i32 = arith.constant 0 : i32
    %c0_i32_0 = arith.constant 0 : i32
    %c0_i32_1 = arith.constant 0 : i32
    return %c0_i32, %c0_i32_0 : i32, i32
  }
  func.func @transform_2(%arg0: i32) -> (i32, i32) {
    %c0_i32 = arith.constant 0 : i32
    %c0_i32_0 = arith.constant 0 : i32
    return %arg0, %c0_i32 : i32, i32
  }
}

</mosaic_0001>

<llo_original>
// kernel: tpu_custom_call.1
$region0: #{tpu_custom_call.1}
  #allocation0 [shape = 'u32[]', space=smem, size = 0x4, offset = 0x4, fixed_abs, tag = 'smem constant byte address 0x4 - core index']
  #allocation1 [shape = 'u32[144,128]{1,0:T(1,128)}', space=vmem, size = 0x12000, scoped, tag = 'internal scratch']
  %s0 = inlined_call_operand.hbm [shape: f32[8,256], index: 0, kind: input, shape index: {}]
  %s1 = inlined_call_operand.hbm [shape: f32[256,128], index: 1, kind: input, shape index: {}]
  %s2 = inlined_call_operand.hbm [shape: f32[8,128], index: 2, kind: output, shape index: {}]
  %s3 = sld [smem:[#allocation0]]
  $region26: #{tpu_custom_call.1} parent=0
    _
  %s5 = ssub.s32 1, %s3
  %s6 = scalar_select 0, %s5, %s3
  $region1: #{tpu_custom_call.1} parent=0
    #allocation2 [shape = 'u8[8192]{0}', space=vmem, size = 0x2000, scoped, tag = 'input window, operand 0, single buffered']
    #allocation3 [shape = 's32[1]{0}', space=sflag, size = 0x4, scoped, tag = 'scoped memory for tpu_custom_call.1']
    #allocation4 [shape = 's32[1]{0}', space=sflag, size = 0x4, scoped, tag = 'scoped memory for tpu_custom_call.1']
    #allocation5 [shape = 'u8[131072]{0}', space=vmem, size = 0x20000, scoped, tag = 'input window, operand 1, single buffered']
    #allocation6 [shape = 's32[1]{0}', space=sflag, size = 0x4, scoped, tag = 'scoped memory for tpu_custom_call.1']
    #allocation7 [shape = 'u8[4096]{0}', space=vmem, size = 0x1000, scoped, tag = 'output window, operand 0, single buffered']
    %7 = vsyncpa [#allocation3], 0
    %8 = vsyncpa [#allocation6], 0
    %9 = vsyncpa [#allocation4], 0
    // Predicated region
    $region2: #{tpu_custom_call.1} parent=1 // pred_check
      _
    $region3: #{tpu_custom_call.1} parent=1 // pred_check_branch
      %11 = sbr.rel (0) target = $region5
    $region4: #{tpu_custom_call.1} parent=1 // pred_region
      %s13 = ssub.s32 256, 256
      %14 = vsyncadd [#allocation3], %s13
      %s16 = sshll.u32 [#allocation2], 4
      %s17 = int_to_ptr.vmem [resolvable:$true] %s16
      %19 = dma.hbm_to_vmem [thread:$0]  %s0, 256, %s17, [#allocation3]
    $region5: #{tpu_custom_call.1} parent=1 // pred_fallthru
      _
    // Predicated region
    $region6: #{tpu_custom_call.1} parent=1 // pred_check
      _
    $region7: #{tpu_custom_call.1} parent=1 // pred_check_branch
      %21 = sbr.rel (0) target = $region9
    $region8: #{tpu_custom_call.1} parent=1 // pred_region
      %s23 = ssub.s32 4096, 4096
      %24 = vsyncadd [#allocation6], %s23
      %s25 = sshll.u32 [#allocation5], 4
      %s26 = int_to_ptr.vmem [resolvable:$true] %s25
      %31 = dma.hbm_to_vmem [thread:$0]  %s1, 4096, %s26, [#allocation6], 128, 128, 8
    $region9: #{tpu_custom_call.1} parent=1 // pred_fallthru
      _
    // Predicated region
    $region10: #{tpu_custom_call.1} parent=1 // pred_check
      _
    $region11: #{tpu_custom_call.1} parent=1 // pred_check_branch
      %33 = sbr.rel (0) target = $region13
    $region12: #{tpu_custom_call.1} parent=1 // pred_region
      %34 = dma.done [#allocation3], 256
    $region13: #{tpu_custom_call.1} parent=1 // pred_fallthru
      _
    // Predicated region
    $region14: #{tpu_custom_call.1} parent=1 // pred_check
      _
    $region15: #{tpu_custom_call.1} parent=1 // pred_check_branch
      %36 = sbr.rel (0) target = $region17
    $region16: #{tpu_custom_call.1} parent=1 // pred_region
      %37 = dma.done [#allocation6], 4096
    $region17: #{tpu_custom_call.1} parent=1 // pred_fallthru
      _
    %v38 = vld [vmem:[#allocation2] sm:$0xff]
    %v39 = vld [vmem:[#allocation2 + $0x8] sm:$0xff]
    %v40 = vld [vmem:[#allocation5] sm:$0xff]
    %v41 = vld [vmem:[#allocation5 + $0x8] sm:$0xff]
    %v42 = vld [vmem:[#allocation5 + $0x10] sm:$0xff]
    %v43 = vld [vmem:[#allocation5 + $0x18] sm:$0xff]
    %v44 = vld [vmem:[#allocation5 + $0x20] sm:$0xff]
    %v45 = vld [vmem:[#allocation5 + $0x28] sm:$0xff]
    %v46 = vld [vmem:[#allocation5 + $0x30] sm:$0xff]
    %v47 = vld [vmem:[#allocation5 + $0x38] sm:$0xff]
    %v48 = vld [vmem:[#allocation5 + $0x40] sm:$0xff]
    %v49 = vld [vmem:[#allocation5 + $0x48] sm:$0xff]
    %v50 = vld [vmem:[#allocation5 + $0x50] sm:$0xff]
    %v51 = vld [vmem:[#allocation5 + $0x58] sm:$0xff]
    %v52 = vld [vmem:[#allocation5 + $0x60] sm:$0xff]
    %v53 = vld [vmem:[#allocation5 + $0x68] sm:$0xff]
    %v54 = vld [vmem:[#allocation5 + $0x70] sm:$0xff]
    %v55 = vld [vmem:[#allocation5 + $0x78] sm:$0xff]
    %v56 = vld [vmem:[#allocation5 + $0x80] sm:$0xff]
    %v57 = vld [vmem:[#allocation5 + $0x88] sm:$0xff]
    %v58 = vld [vmem:[#allocation5 + $0x90] sm:$0xff]
    %v59 = vld [vmem:[#allocation5 + $0x98] sm:$0xff]
    %v60 = vld [vmem:[#allocation5 + $0xa0] sm:$0xff]
    %v61 = vld [vmem:[#allocation5 + $0xa8] sm:$0xff]
    %v62 = vld [vmem:[#allocation5 + $0xb0] sm:$0xff]
    %v63 = vld [vmem:[#allocation5 + $0xb8] sm:$0xff]
    %v64 = vld [vmem:[#allocation5 + $0xc0] sm:$0xff]
    %v65 = vld [vmem:[#allocation5 + $0xc8] sm:$0xff]
    %v66 = vld [vmem:[#allocation5 + $0xd0] sm:$0xff]
    %v67 = vld [vmem:[#allocation5 + $0xd8] sm:$0xff]
    %v68 = vld [vmem:[#allocation5 + $0xe0] sm:$0xff]
    %v69 = vld [vmem:[#allocation5 + $0xe8] sm:$0xff]
    %v70 = vld [vmem:[#allocation5 + $0xf0] sm:$0xff]
    %v71 = vld [vmem:[#allocation5 + $0xf8] sm:$0xff]
    %72 = vmatprep.subr.mxu0 0.0
    %73 = vmatpush1.msra.mxu0 %v40
    %74 = vmatprep.subr.mxu0 0.0
    %75 = vmatpush1.msra.mxu0 %v41
    %76 = vmatprep.subr.mxu0 0.0
    %77 = vmatpush1.msra.mxu0 %v42
    %78 = vmatprep.subr.mxu0 0.0
    %79 = vmatpush1.msra.mxu0 %v43
    %80 = vmatprep.subr.mxu0 0.0
    %81 = vmatpush1.msra.mxu0 %v44
    %82 = vmatprep.subr.mxu0 0.0
    %83 = vmatpush1.msra.mxu0 %v45
    %84 = vmatprep.subr.mxu0 0.0
    %85 = vmatpush1.msra.mxu0 %v46
    %86 = vmatprep.subr.mxu0 0.0
    %87 = vmatpush1.msra.mxu0 %v47
    %88 = vmatprep.subr.mxu0 0.0
    %89 = vmatpush1.msra.mxu0 %v48
    %90 = vmatprep.subr.mxu0 0.0
    %91 = vmatpush1.msra.mxu0 %v49
    %92 = vmatprep.subr.mxu0 0.0
    %93 = vmatpush1.msra.mxu0 %v50
    %94 = vmatprep.subr.mxu0 0.0
    %95 = vmatpush1.msra.mxu0 %v51
    %96 = vmatprep.subr.mxu0 0.0
    %97 = vmatpush1.msra.mxu0 %v52
    %98 = vmatprep.subr.mxu0 0.0
    %99 = vmatpush1.msra.mxu0 %v53
    %100 = vmatprep.subr.mxu0 0.0
    %101 = vmatpush1.msra.mxu0 %v54
    %102 = vmatprep.subr.mxu0 0.0
    %103 = vmatpush1.msra.mxu0 %v55
    %104 = vmatprep.subr.mxu0 0.0
    %105 = vmatpush1.msra.mxu0 %v56
    %106 = vmatprep.subr.mxu0 0.0
    %107 = vmatpush1.msra.mxu0 %v57
    %108 = vmatprep.subr.mxu0 0.0
    %109 = vmatpush1.msra.mxu0 %v58
    %110 = vmatprep.subr.mxu0 0.0
    %111 = vmatpush1.msra.mxu0 %v59
    %112 = vmatprep.subr.mxu0 0.0
    %113 = vmatpush1.msra.mxu0 %v60
    %114 = vmatprep.subr.mxu0 0.0
    %115 = vmatpush1.msra.mxu0 %v61
    %116 = vmatprep.subr.mxu0 0.0
    %117 = vmatpush1.msra.mxu0 %v62
    %118 = vmatprep.subr.mxu0 0.0
    %119 = vmatpush1.msra.mxu0 %v63
    %120 = vmatprep.subr.mxu0 0.0
    %121 = vmatpush1.msra.mxu0 %v64
    %122 = vmatprep.subr.mxu0 0.0
    %123 = vmatpush1.msra.mxu0 %v65
    %124 = vmatprep.subr.mxu0 0.0
    %125 = vmatpush1.msra.mxu0 %v66
    %126 = vmatprep.subr.mxu0 0.0
    %127 = vmatpush1.msra.mxu0 %v67
    %128 = vmatprep.subr.mxu0 0.0
    %129 = vmatpush1.msra.mxu0 %v68
    %130 = vmatprep.subr.mxu0 0.0
    %131 = vmatpush1.msra.mxu0 %v69
    %132 = vmatprep.subr.mxu0 0.0
    %133 = vmatpush1.msra.mxu0 %v70
    %134 = vmatprep.subr.mxu0 0.0
    %135 = vmatpush1.msra.mxu0 %v71
    %136 = vmatprep.mubr.f32.mxu0 %v39
    %137 = vmatmul.mubr.f32.gmra.mrb[0].mxu0 %v38
    %v138 = vpop.f32.mrb[0].mxu0
    %v139 = vadd.f32 0.0, %v138
    %v140 = vpop.f32.mrb[0].mxu0
    %141 = vdwg.mxu0
    %142 = vst [vmem:[#allocation7] sm:$0xff] %v139
    // Predicated region
    $region18: #{tpu_custom_call.1} parent=1 // pred_check
      _
    $region19: #{tpu_custom_call.1} parent=1 // pred_check_branch
      %144 = sbr.rel (0) target = $region21
    $region20: #{tpu_custom_call.1} parent=1 // pred_region
      %s146 = ssub.s32 128, 128
      %147 = vsyncadd [#allocation4], %s146
      %s149 = sshll.u32 [#allocation7], 4
      %s150 = int_to_ptr.vmem [resolvable:$true] %s149
      %152 = dma.vmem_to_hbm [thread:$0]  %s150, 128, %s2, [#allocation4]
    $region21: #{tpu_custom_call.1} parent=1 // pred_fallthru
      _
    // Predicated region
    $region22: #{tpu_custom_call.1} parent=1 // pred_check
      _
    $region23: #{tpu_custom_call.1} parent=1 // pred_check_branch
      %154 = sbr.rel (0) target = $region25
    $region24: #{tpu_custom_call.1} parent=1 // pred_region
      %155 = dma.done [#allocation4], 128
    $region25: #{tpu_custom_call.1} parent=1 // pred_fallthru
      _
    %156 = vsyncpa [#allocation3], 1
    %157 = vsyncpa [#allocation6], 1
    %158 = vsyncpa [#allocation4], 1

</llo_original>
